<compile_context>
chip_gen: v6e
topology: v6e:2x2x1
jax: 0.10.0
libtpu: 0.0.40
codegen_flags: <defaults>
</compile_context>

<pallas_src>
import functools

import jax
import jax.numpy as jnp
from jax import lax
from jax.experimental import pallas as pl
from jax.experimental.pallas import tpu as pltpu

_LANE = 128   # lanes per vreg
_SUB = 8      # sublanes per vreg


def _pick_block_rows(itemsize):
    """Generation- and dtype-aware row-block size (multiple of 8)."""
    try:
        kind = jax.devices()[0].device_kind.lower()
    except Exception:  # pragma: no cover - defensive
        kind = ""
    # v7x: 4 MiB/input block (16 MiB double-buffered, fits 32 MiB scoped VMEM).
    # v5e/v6e (and unknown): 2 MiB/input block (8 MiB, fits v5e's 16 MiB).
    base = 8192 if "v7" in kind else 4096
    # Narrower dtypes halve the DMA bytes per row; double rows to keep the
    # per-step HBM bytes (and hence per-step overhead amortization) constant.
    return base * max(1, 4 // max(1, int(itemsize)))


def _mse_partial_kernel(x_ref, y_ref, o_ref, *, block_rows, rows, needs_mask):
    """Accumulate sublane-structured partial sums of (x - y)^2."""
    j = pl.program_id(0)

    @pl.when(j == 0)
    def _():
        o_ref[...] = jnp.zeros_like(o_ref)

    d = x_ref[...].astype(jnp.float32) - y_ref[...].astype(jnp.float32)
    sq = d * d

    if block_rows % _SUB == 0:
        # Pure VPU adds per step; the cross-lane reduce happens once, outside.
        def accumulate(vals):
            o_ref[...] += jnp.sum(
                vals.reshape(block_rows // _SUB, _SUB, _LANE), axis=0)
    else:
        # Tiny-input fallback (rows < 8): a single block == the whole array.
        def accumulate(vals):
            o_ref[...] += vals

    if needs_mask:
        last = pl.num_programs(0) - 1

        @pl.when(j != last)
        def _():
            accumulate(sq)

        @pl.when(j == last)
        def _():
            # Only the final block is partial: mask rows past the true extent.
            row = j * block_rows + lax.broadcasted_iota(
                jnp.int32, (block_rows, _LANE), 0)
            accumulate(jnp.where(row < rows, sq, 0.0))
    else:
        accumulate(sq)


def mse_loss_weighted(outputs, targets, weight):
    """weight * mean((outputs - targets)^2), computed with a Pallas kernel."""
    assert outputs.shape == targets.shape
    n = int(outputs.size)
    if n == 0:
        return jnp.float32(0.0)

    xf = outputs.reshape(-1)
    yf = targets.reshape(-1)
    rows = n // _LANE
    rem = n % _LANE

    total = jnp.float32(0.0)

    if rem:
        # <128 straggler elements: fold in with a tiny JAX reduction instead of
        # pad-copying the whole array in HBM.
        dx = (xf[rows * _LANE:].astype(jnp.float32)
              - yf[rows * _LANE:].astype(jnp.float32))
        total = total + jnp.sum(dx * dx)

    if rows:
        if rem:
            x2 = xf[: rows * _LANE].reshape(rows, _LANE)
            y2 = yf[: rows * _LANE].reshape(rows, _LANE)
        else:
            x2 = xf.reshape(rows, _LANE)   # free reshape (no copy)
            y2 = yf.reshape(rows, _LANE)

        itemsize = jnp.dtype(outputs.dtype).itemsize
        max_rows = _pick_block_rows(itemsize)
        if rows >= _SUB:
            block_rows = min(max_rows, (rows // _SUB) * _SUB)
        else:
            block_rows = rows
        num_blocks = pl.cdiv(rows, block_rows)
        needs_mask = (rows % block_rows) != 0
        acc_rows = _SUB if block_rows % _SUB == 0 else block_rows

        cost = pl.CostEstimate(
            flops=3 * rows * _LANE,
            transcendentals=0,
            bytes_accessed=2 * rows * _LANE * int(itemsize) + 4 * acc_rows * _LANE,
        )

        partial = pl.pallas_call(
            functools.partial(_mse_partial_kernel, block_rows=block_rows,
                              rows=rows, needs_mask=needs_mask),
            out_shape=jax.ShapeDtypeStruct((acc_rows, _LANE), jnp.float32),
            grid=(num_blocks,),
            in_specs=[
                pl.BlockSpec((block_rows, _LANE), lambda j: (j, 0)),
                pl.BlockSpec((block_rows, _LANE), lambda j: (j, 0)),
            ],
            out_specs=pl.BlockSpec((acc_rows, _LANE), lambda j: (0, 0)),
            compiler_params=pltpu.CompilerParams(
                dimension_semantics=("arbitrary",)),
            cost_estimate=cost,
        )(x2, y2)

        # O(1) epilogue: single cross-lane reduce of the resident accumulator.
        total = total + jnp.sum(partial)

    return total * jnp.asarray(weight, dtype=jnp.float32) * jnp.float32(1.0 / n)


if __name__ == "__main__":
    key = jax.random.PRNGKey(0)
    k1, k2, k3, k4 = jax.random.split(key, 4)

    # Small NCHW-shaped example inputs (batch=2, channels=4, spatial=16).
    outputs = jax.random.normal(k1, (2, 4, 16, 16), dtype=jnp.float32)
    targets = jax.random.normal(k2, (2, 4, 16, 16), dtype=jnp.float32)
    weight = 0.75

    loss = mse_loss_weighted(outputs, targets, weight)
    jax.block_until_ready(loss)

    ref = jnp.mean((outputs - targets) ** 2) * jnp.float32(weight)
    assert jnp.allclose(loss, ref, rtol=1e-5, atol=1e-6), (loss, ref)

    # Exercise the masked-tail + ragged-remainder path as well.
    out2 = jax.random.normal(k3, (3, 5, 7, 11), dtype=jnp.float32)
    tgt2 = jax.random.normal(k4, (3, 5, 7, 11), dtype=jnp.float32)
    loss2 = mse_loss_weighted(out2, tgt2, 1.25)
    jax.block_until_ready(loss2)
    ref2 = jnp.mean((out2 - tgt2) ** 2) * jnp.float32(1.25)
    assert jnp.allclose(loss2, ref2, rtol=1e-5, atol=1e-6), (loss2, ref2)

    print("KERNEL_OK")
</pallas_src>

<mosaic_0001>
module attributes {stable_mosaic.version = 11 : i64} {
  func.func @_mse_partial_kernel(%arg0: i32, %arg1: memref<16x128xf32, #tpu.memory_space<vmem>>, %arg2: memref<16x128xf32, #tpu.memory_space<vmem>>, %arg3: memref<8x128xf32, #tpu.memory_space<vmem>>) attributes {dimension_semantics = [#tpu.dimension_semantics<arbitrary>], iteration_bounds = array<i64: 1>, scalar_prefetch = 0 : i64, scratch_operands = 0 : i64, tpu.core_type = #tpu.core_type<tc>, window_params = [{transform_indices = @transform_0, window_bounds = array<i64: 16, 128>}, {transform_indices = @transform_1, window_bounds = array<i64: 16, 128>}, {pipeline_mode = #tpu.pipeline_mode<synchronous>, transform_indices = @transform_2, window_bounds = array<i64: 8, 128>}]} {
    %c0_i32 = arith.constant 0 : i32
    %0 = arith.cmpi eq, %arg0, %c0_i32 : i32
    %1 = arith.extui %0 : i1 to i32
    %c0_i32_0 = arith.constant 0 : i32
    %2 = arith.cmpi ne, %1, %c0_i32_0 : i32
    scf.if %2 {
      %cst_8 = arith.constant 0.000000e+00 : f32
      %12 = vector.broadcast %cst_8 : f32 to vector<8x128xf32>
      %c0_9 = arith.constant 0 : index
      %c0_10 = arith.constant 0 : index
      %13 = vector.load %arg3[%c0_9, %c0_10] : memref<8x128xf32, #tpu.memory_space<vmem>>, vector<8x128xf32>
      tpu.vector_store %arg3[%c0_9, %c0_10], %12 {strides = array<i32>} : memref<8x128xf32, #tpu.memory_space<vmem>>, vector<8x128xf32>,
    } else {
    }
    %c0 = arith.constant 0 : index
    %c0_1 = arith.constant 0 : index
    %3 = vector.load %arg1[%c0, %c0_1] : memref<16x128xf32, #tpu.memory_space<vmem>>, vector<16x128xf32>
    %c0_2 = arith.constant 0 : index
    %c0_3 = arith.constant 0 : index
    %4 = vector.load %arg2[%c0_2, %c0_3] : memref<16x128xf32, #tpu.memory_space<vmem>>, vector<16x128xf32>
    %5 = arith.subf %3, %4 : vector<16x128xf32>
    %6 = arith.mulf %5, %5 : vector<16x128xf32>
    %c0_4 = arith.constant 0 : index
    %c0_5 = arith.constant 0 : index
    %7 = vector.load %arg3[%c0_4, %c0_5] : memref<8x128xf32, #tpu.memory_space<vmem>>, vector<8x128xf32>
    %8 = vector.shape_cast %6 : vector<16x128xf32> to vector<2x8x128xf32>
    %cst = arith.constant dense<0.000000e+00> : vector<8x128xf32>
    %9 = vector.multi_reduction <add>, %8, %cst [0] : vector<2x8x128xf32> to vector<8x128xf32>
    %10 = arith.addf %7, %9 : vector<8x128xf32>
    %c0_6 = arith.constant 0 : index
    %c0_7 = arith.constant 0 : index
    %11 = vector.load %arg3[%c0_6, %c0_7] : memref<8x128xf32, #tpu.memory_space<vmem>>, vector<8x128xf32>
    tpu.vector_store %arg3[%c0_6, %c0_7], %10 {strides = array<i32>} : memref<8x128xf32, #tpu.memory_space<vmem>>, vector<8x128xf32>,
    return
  }
  func.func @transform_0(%arg0: i32) -> (i32, i32) {
    %c0_i32 = arith.constant 0 : i32
    %c0_i32_0 = arith.constant 0 : i32
    return %arg0, %c0_i32 : i32, i32
  }
  func.func @transform_1(%arg0: i32) -> (i32, i32) {
    %c0_i32 = arith.constant 0 : i32
    %c0_i32_0 = arith.constant 0 : i32
    return %arg0, %c0_i32 : i32, i32
  }
  func.func @transform_2(%arg0: i32) -> (i32, i32) {
    %c0_i32 = arith.constant 0 : i32
    %c0_i32_0 = arith.constant 0 : i32
    %c0_i32_1 = arith.constant 0 : i32
    return %c0_i32, %c0_i32_0 : i32, i32
  }
}

</mosaic_0001>

<llo_original>
// kernel: tpu_custom_call.1
$region0: #{tpu_custom_call.1}
  #allocation0 [shape = 'u32[]', space=smem, size = 0x4, offset = 0x4, fixed_abs, tag = 'smem constant byte address 0x4 - core index']
  #allocation1 [shape = 'u32[144,128]{1,0:T(1,128)}', space=vmem, size = 0x12000, scoped, tag = 'internal scratch']
  %s0 = inlined_call_operand.hbm [shape: f32[16,128], index: 0, kind: input, shape index: {}]
  %s1 = inlined_call_operand.hbm [shape: f32[16,128], index: 1, kind: input, shape index: {}]
  %s2 = inlined_call_operand.hbm [shape: f32[8,128], index: 2, kind: output, shape index: {}]
  %s3 = sld [smem:[#allocation0]]
  $region30: #{tpu_custom_call.1} parent=0
    _
  %s5 = ssub.s32 1, %s3
  %s6 = scalar_select 0, %s5, %s3
  $region1: #{tpu_custom_call.1} parent=0
    #allocation2 [shape = 'u8[8192]{0}', space=vmem, size = 0x2000, scoped, tag = 'input window, operand 0, single buffered']
    #allocation3 [shape = 's32[1]{0}', space=sflag, size = 0x4, scoped, tag = 'scoped memory for tpu_custom_call.1']
    #allocation4 [shape = 's32[1]{0}', space=sflag, size = 0x4, scoped, tag = 'scoped memory for tpu_custom_call.1']
    #allocation5 [shape = 'u8[8192]{0}', space=vmem, size = 0x2000, scoped, tag = 'input window, operand 1, single buffered']
    #allocation6 [shape = 's32[1]{0}', space=sflag, size = 0x4, scoped, tag = 'scoped memory for tpu_custom_call.1']
    #allocation7 [shape = 'u8[4096]{0}', space=vmem, size = 0x1000, scoped, tag = 'output window, operand 0, single buffered']
    %7 = vsyncpa [#allocation3], 0
    %8 = vsyncpa [#allocation6], 0
    %9 = vsyncpa [#allocation4], 0
    // Predicated region
    $region2: #{tpu_custom_call.1} parent=1 // pred_check
      _
    $region3: #{tpu_custom_call.1} parent=1 // pred_check_branch
      %11 = sbr.rel (0) target = $region5
    $region4: #{tpu_custom_call.1} parent=1 // pred_region
      %s13 = ssub.s32 256, 256
      %14 = vsyncadd [#allocation3], %s13
      %s15 = sshll.u32 [#allocation2], 4
      %s16 = int_to_ptr.vmem [resolvable:$true] %s15
      %21 = dma.hbm_to_vmem [thread:$0]  %s0, 256, %s16, [#allocation3], 128, 128, 8
    $region5: #{tpu_custom_call.1} parent=1 // pred_fallthru
      _
    // Predicated region
    $region6: #{tpu_custom_call.1} parent=1 // pred_check
      _
    $region7: #{tpu_custom_call.1} parent=1 // pred_check_branch
      %23 = sbr.rel (0) target = $region9
    $region8: #{tpu_custom_call.1} parent=1 // pred_region
      %s25 = ssub.s32 256, 256
      %26 = vsyncadd [#allocation6], %s25
      %s27 = sshll.u32 [#allocation5], 4
      %s28 = int_to_ptr.vmem [resolvable:$true] %s27
      %33 = dma.hbm_to_vmem [thread:$0]  %s1, 256, %s28, [#allocation6], 128, 128, 8
    $region9: #{tpu_custom_call.1} parent=1 // pred_fallthru
      _
    // Predicated region
    $region10: #{tpu_custom_call.1} parent=1 // pred_check
      _
    $region11: #{tpu_custom_call.1} parent=1 // pred_check_branch
      %35 = sbr.rel (0) target = $region13
    $region12: #{tpu_custom_call.1} parent=1 // pred_region
      %36 = dma.done [#allocation3], 256
    $region13: #{tpu_custom_call.1} parent=1 // pred_fallthru
      _
    // Predicated region
    $region14: #{tpu_custom_call.1} parent=1 // pred_check
      _
    $region15: #{tpu_custom_call.1} parent=1 // pred_check_branch
      %38 = sbr.rel (0) target = $region17
    $region16: #{tpu_custom_call.1} parent=1 // pred_region
      %39 = dma.done [#allocation6], 256
    $region17: #{tpu_custom_call.1} parent=1 // pred_fallthru
      _
    %p40 = scmp.eq.s32.totalorder 0, 0
    // Predicated region
    $region18: #{tpu_custom_call.1} parent=1 // pred_check
      %p41 = pneg %p40
    $region19: #{tpu_custom_call.1} parent=1 // pred_check_branch
      %43 = sbr.rel (%p41) target = $region21
    $region20: #{tpu_custom_call.1} parent=1 // pred_region
      %44 = vst [vmem:[#allocation7] sm:$0xff] 0.0
    $region21: #{tpu_custom_call.1} parent=1 // pred_fallthru
      _
    %v45 = vld [vmem:[#allocation2] sm:$0xff]
    %v46 = vld [vmem:[#allocation2 + $0x8] sm:$0xff]
    %v47 = vld [vmem:[#allocation5] sm:$0xff]
    %v48 = vld [vmem:[#allocation5 + $0x8] sm:$0xff]
    %v49 = vsub.f32 %v45, %v47
    %v50 = vsub.f32 %v46, %v48
    %v51 = vmul.f32 %v49, %v49
    %v52 = vmul.f32 %v50, %v50
    %v53 = vld [vmem:[#allocation7] sm:$0xff]
    %v54 = vadd.f32 %v51, %v52
    %v55 = vadd.f32 %v53, %v54
    %56 = vst [vmem:[#allocation7] sm:$0xff] %v55
    // Predicated region
    $region22: #{tpu_custom_call.1} parent=1 // pred_check
      _
    $region23: #{tpu_custom_call.1} parent=1 // pred_check_branch
      %58 = sbr.rel (0) target = $region25
    $region24: #{tpu_custom_call.1} parent=1 // pred_region
      %s60 = ssub.s32 128, 128
      %61 = vsyncadd [#allocation4], %s60
      %s63 = sshll.u32 [#allocation7], 4
      %s64 = int_to_ptr.vmem [resolvable:$true] %s63
      %66 = dma.vmem_to_hbm [thread:$0]  %s64, 128, %s2, [#allocation4]
    $region25: #{tpu_custom_call.1} parent=1 // pred_fallthru
      _
    // Predicated region
    $region26: #{tpu_custom_call.1} parent=1 // pred_check
      _
    $region27: #{tpu_custom_call.1} parent=1 // pred_check_branch
      %68 = sbr.rel (0) target = $region29
    $region28: #{tpu_custom_call.1} parent=1 // pred_region
      %69 = dma.done [#allocation4], 128
    $region29: #{tpu_custom_call.1} parent=1 // pred_fallthru
      _
    %70 = vsyncpa [#allocation3], 1
    %71 = vsyncpa [#allocation6], 1
    %72 = vsyncpa [#allocation4], 1

</llo_original>
